<compile_context>
chip_gen: v7x
topology: tpu7x:2x2x1
jax: 0.10.0
libtpu: 0.0.40
codegen_flags: <defaults>
</compile_context>

<pallas_src>
import math

import jax
import jax.numpy as jnp
from jax.experimental import pallas as pl
from jax.experimental.pallas import tpu as pltpu


def _make_kernel(n_items: int):
    """Kernel for one row tile. refs = (factor, x_0..x_{n-1}, o_0..o_{n-1})."""

    def kernel(factor_ref, *refs):
        x_refs = refs[:n_items]
        out_refs = refs[n_items:]
        for i in range(n_items):
            x = x_refs[i][...]              # (tile_rows, H_i), native dtype
            f = factor_ref[i]               # (tile_rows, 1) f32, sublane-resident
            # Lane-broadcast of a sublane-resident factor; multiply in native dtype.
            out_refs[i][...] = x * f.astype(x.dtype)

    return kernel


def _round_up(x: int, m: int) -> int:
    return ((x + m - 1) // m) * m


def _vmem_capacity_bytes() -> int:
    try:
        return int(pltpu.get_tpu_info().vmem_capacity_bytes)
    except Exception:
        return 64 * 1024 * 1024  # conservative default (v7x per-TC)


def _choose_tile_rows(rows, hidden_sizes, itemsizes, n_items, budget_bytes,
                      min_grid_steps=4):
    """Row tile: multiple of 8, <= 512, padded+double-buffered footprint <= budget,
    and small enough that the grid has >= min_grid_steps steps (when rows allow)."""
    if rows <= 8:
        return rows  # full extent: always a legal block shape

    # Real per-tile-row VMEM cost, lane-padded and double-buffered (in + out).
    bytes_per_row = sum(4 * _round_up(h, 128) * sz
                        for h, sz in zip(hidden_sizes, itemsizes))
    # Stacked factor block: (n, tile_rows, 1) f32 pads the lane dim to 128.
    bytes_per_row += 2 * n_items * 128 * 4

    tile = 512
    while tile > 8 and tile * bytes_per_row > budget_bytes:
        tile //= 2

    # Guarantee enough grid steps for 2-TC sharding + pipeline overlap (v7x).
    step_cap = max(8, _round_up(pl.cdiv(rows, min_grid_steps), 8))
    tile = min(tile, step_cap)

    if rows <= tile:
        return rows
    return tile


def _apply_independent_dropout(items, factors):
    """items: list of (B, S, ...) arrays; factors: list of (B, S) f32 scale maps."""
    n = len(items)
    B, S = items[0].shape[:2]
    rows = B * S

    hidden_sizes = [int(math.prod(it.shape[2:])) for it in items]
    items2d = [it.reshape(rows, h) for it, h in zip(items, hidden_sizes)]
    # Single stacked factor input: (n, rows, 1) f32.
    factor3d = jnp.stack([f.reshape(rows, 1) for f in factors], axis=0)
    factor3d = factor3d.astype(jnp.float32)
    itemsizes = [jnp.dtype(it.dtype).itemsize for it in items]

    vmem_cap = _vmem_capacity_bytes()
    tile_rows = _choose_tile_rows(rows, hidden_sizes, itemsizes, n,
                                  budget_bytes=int(0.4 * vmem_cap))
    grid = (pl.cdiv(rows, tile_rows),)

    factor_spec = pl.BlockSpec((n, tile_rows, 1), lambda i: (0, i, 0))
    item_specs = [pl.BlockSpec((tile_rows, h), lambda i: (i, 0)) for h in hidden_sizes]
    out_specs = tuple(pl.BlockSpec((tile_rows, h), lambda i: (i, 0)) for h in hidden_sizes)

    out2d = pl.pallas_call(
        _make_kernel(n),
        grid=grid,
        in_specs=[factor_spec] + item_specs,
        out_specs=out_specs,
        out_shape=tuple(
            jax.ShapeDtypeStruct((rows, h), it.dtype)
            for it, h in zip(items, hidden_sizes)
        ),
        compiler_params=pltpu.CompilerParams(
            dimension_semantics=(pltpu.PARALLEL,),
            vmem_limit_bytes=min(int(0.75 * vmem_cap), 128 * 1024 * 1024),
        ),
    )(factor3d, *items2d)

    return [o.reshape(it.shape) for o, it in zip(out2d, items)]


def independent_dropout(items, key, p: float = 0.5, training: bool = True):
    """Pallas implementation of IndependentDropout.forward(*items).

    items: list of arrays, each (batch, seq, ...); all must share shape[:2].
    key:   jax.random key used to draw the per-item Bernoulli masks.
    """
    items = list(items)
    if not training or p == 0.0:
        return items  # identity, like the PyTorch module in eval / p=0

    n = len(items)
    B, S = items[0].shape[:2]
    for it in items:
        assert it.ndim >= 3 and it.shape[:2] == (B, S), \
            "all items must share shape[:2] and have a trailing feature dim"

    keys = jax.random.split(key, n)
    masks = [jax.random.bernoulli(keys[i], 1.0 - p, (B, S)).astype(jnp.float32)
             for i in range(n)]
    total = masks[0]
    for m in masks[1:]:
        total = total + m
    scale = jnp.float32(n) / jnp.maximum(total, jnp.float32(1.0))
    factors = [m * scale for m in masks]      # tiny (B, S) wrapper-side math
    return _apply_independent_dropout(items, factors)


if __name__ == "__main__":
    key = jax.random.PRNGKey(0)
    kx, ky, kdrop = jax.random.split(key, 3)

    B, S, H = 2, 8, 32
    p = 0.5
    x = jax.random.normal(kx, (B, S, H), dtype=jnp.float32)
    y = jax.random.normal(ky, (B, S, H), dtype=jnp.float32)

    outs = independent_dropout([x, y], kdrop, p=p, training=True)
    outs = [jax.block_until_ready(o) for o in outs]

    # Pure-JAX reference using the exact same mask draws as the wrapper.
    mask_keys = jax.random.split(kdrop, 2)
    ref_masks = [
        jax.random.bernoulli(mask_keys[i], 1.0 - p, (B, S)).astype(jnp.float32)
        for i in range(2)
    ]
    total = ref_masks[0] + ref_masks[1]
    scale = 2.0 / jnp.maximum(total, 1.0)
    refs = [it * (m * scale)[:, :, None] for it, m in zip([x, y], ref_masks)]

    for inp, out, ref in zip([x, y], outs, refs):
        assert out.shape == inp.shape and out.dtype == inp.dtype
        assert bool(jnp.all(jnp.isfinite(out)))
        assert bool(jnp.allclose(out, ref, atol=1e-6, rtol=1e-6)), \
            "kernel output does not match reference"
        # For p=0.5, n=2 every per-row factor is in {0, 1, 2}.
        ratio = jnp.where(jnp.abs(inp) > 1e-6, out / inp, 0.0)
        row_max = jnp.max(ratio, axis=-1)
        ok = jnp.all(
            (jnp.abs(row_max - 0.0) < 1e-5)
            | (jnp.abs(row_max - 1.0) < 1e-5)
            | (jnp.abs(row_max - 2.0) < 1e-5)
        )
        assert bool(ok), "unexpected per-row scale factor"

    print("KERNEL_OK")
</pallas_src>

<mosaic_0001>
module attributes {stable_mosaic.version = 11 : i64} {
  func.func @kernel(%arg0: i32, %arg1: memref<2x8x1xf32, #tpu.memory_space<vmem>>, %arg2: memref<8x32xf32, #tpu.memory_space<vmem>>, %arg3: memref<8x32xf32, #tpu.memory_space<vmem>>, %arg4: memref<8x32xf32, #tpu.memory_space<vmem>>, %arg5: memref<8x32xf32, #tpu.memory_space<vmem>>) attributes {dimension_semantics = [#tpu.dimension_semantics<parallel>], iteration_bounds = array<i64: 2>, scalar_prefetch = 0 : i64, scratch_operands = 0 : i64, tpu.core_type = #tpu.core_type<tc>, window_params = [{transform_indices = @transform_0, window_bounds = array<i64: 2, 8, 1>}, {transform_indices = @transform_1, window_bounds = array<i64: 8, 32>}, {transform_indices = @transform_2, window_bounds = array<i64: 8, 32>}, {transform_indices = @transform_3, window_bounds = array<i64: 8, 32>}, {transform_indices = @transform_4, window_bounds = array<i64: 8, 32>}]} {
    %c0 = arith.constant 0 : index
    %c0_0 = arith.constant 0 : index
    %0 = vector.load %arg2[%c0, %c0_0] : memref<8x32xf32, #tpu.memory_space<vmem>>, vector<8x32xf32>
    %c0_1 = arith.constant 0 : index
    %c0_2 = arith.constant 0 : index
    %c0_3 = arith.constant 0 : index
    %1 = vector.load %arg1[%c0_1, %c0_2, %c0_3] : memref<2x8x1xf32, #tpu.memory_space<vmem>>, vector<1x8x1xf32>
    %2 = vector.shape_cast %1 : vector<1x8x1xf32> to vector<8x1xf32>
    %3 = vector.broadcast %2 : vector<8x1xf32> to vector<8x32xf32>
    %4 = arith.mulf %0, %3 : vector<8x32xf32>
    %c0_4 = arith.constant 0 : index
    %c0_5 = arith.constant 0 : index
    %5 = vector.load %arg4[%c0_4, %c0_5] : memref<8x32xf32, #tpu.memory_space<vmem>>, vector<8x32xf32>
    tpu.vector_store %arg4[%c0_4, %c0_5], %4 {strides = array<i32>} : memref<8x32xf32, #tpu.memory_space<vmem>>, vector<8x32xf32>,
    %c0_6 = arith.constant 0 : index
    %c0_7 = arith.constant 0 : index
    %6 = vector.load %arg3[%c0_6, %c0_7] : memref<8x32xf32, #tpu.memory_space<vmem>>, vector<8x32xf32>
    %c1 = arith.constant 1 : index
    %c0_8 = arith.constant 0 : index
    %c0_9 = arith.constant 0 : index
    %7 = vector.load %arg1[%c1, %c0_8, %c0_9] : memref<2x8x1xf32, #tpu.memory_space<vmem>>, vector<1x8x1xf32>
    %8 = vector.shape_cast %7 : vector<1x8x1xf32> to vector<8x1xf32>
    %9 = vector.broadcast %8 : vector<8x1xf32> to vector<8x32xf32>
    %10 = arith.mulf %6, %9 : vector<8x32xf32>
    %c0_10 = arith.constant 0 : index
    %c0_11 = arith.constant 0 : index
    %11 = vector.load %arg5[%c0_10, %c0_11] : memref<8x32xf32, #tpu.memory_space<vmem>>, vector<8x32xf32>
    tpu.vector_store %arg5[%c0_10, %c0_11], %10 {strides = array<i32>} : memref<8x32xf32, #tpu.memory_space<vmem>>, vector<8x32xf32>,
    return
  }
  func.func @transform_0(%arg0: i32) -> (i32, i32, i32) {
    %c0_i32 = arith.constant 0 : i32
    %c0_i32_0 = arith.constant 0 : i32
    %c0_i32_1 = arith.constant 0 : i32
    return %c0_i32, %arg0, %c0_i32_0 : i32, i32, i32
  }
  func.func @transform_1(%arg0: i32) -> (i32, i32) {
    %c0_i32 = arith.constant 0 : i32
    %c0_i32_0 = arith.constant 0 : i32
    return %arg0, %c0_i32 : i32, i32
  }
  func.func @transform_2(%arg0: i32) -> (i32, i32) {
    %c0_i32 = arith.constant 0 : i32
    %c0_i32_0 = arith.constant 0 : i32
    return %arg0, %c0_i32 : i32, i32
  }
  func.func @transform_3(%arg0: i32) -> (i32, i32) {
    %c0_i32 = arith.constant 0 : i32
    %c0_i32_0 = arith.constant 0 : i32
    return %arg0, %c0_i32 : i32, i32
  }
  func.func @transform_4(%arg0: i32) -> (i32, i32) {
    %c0_i32 = arith.constant 0 : i32
    %c0_i32_0 = arith.constant 0 : i32
    return %arg0, %c0_i32 : i32, i32
  }
}

</mosaic_0001>

<llo_original>
// kernel: tpu_custom_call.1
$region0: #{tpu_custom_call.1}
  #allocation0 [shape = 'u32[]', space=smem, size = 0x4, offset = 0x4, fixed_abs, tag = 'smem constant byte address 0x4 - core index']
  #allocation1 [shape = 'u32[144,128]{1,0:T(1,128)}', space=vmem, size = 0x12000, scoped, tag = 'internal scratch']
  %s0 = inlined_call_operand.vmem [shape: f32[2,16,1], index: 0, kind: input, shape index: {}]
  %s1 = inlined_call_operand.vmem [shape: f32[16,32], index: 1, kind: input, shape index: {}]
  %s2 = inlined_call_operand.vmem [shape: f32[16,32], index: 2, kind: input, shape index: {}]
  %s3 = inlined_call_operand.hbm [shape: f32[16,32], index: 3, kind: output, shape index: {0}]
  %s4 = inlined_call_operand.hbm [shape: f32[16,32], index: 4, kind: output, shape index: {1}]
  %5 = xla_tuple %s3, %s4
  %s6 = sld [smem:[#allocation0]]
  $region91: #{tpu_custom_call.1} parent=0
    _
  %s8 = ssub.s32 1, %s6
  %s9 = scalar_select 0, %s8, %s6
  $region1: #{tpu_custom_call.1} parent=0
    #allocation2 [shape = 'u8[16384]{0}', space=vmem, size = 0x4000, scoped, tag = 'input window, operand 0']
    #allocation3 [shape = 'u8[8192]{0}', space=vmem, size = 0x2000, scoped, tag = 'output window, operand 0']
    #allocation4 [shape = 's32[2]{0}', space=sflag, size = 0x8, scoped, tag = 'scoped memory for tpu_custom_call.1']
    #allocation5 [shape = 'u8[8192]{0}', space=vmem, size = 0x2000, scoped, tag = 'output window, operand 1']
    #allocation6 [shape = 's32[2]{0}', space=sflag, size = 0x8, scoped, tag = 'scoped memory for tpu_custom_call.1']
    %10 = vsyncpa [#allocation4], 0
    %s11 = scalar_lea.sflag [#allocation4], 1
    %12 = vsyncpa %s11, 0
    %13 = vsyncpa [#allocation6], 0
    %s14 = scalar_lea.sflag [#allocation6], 1
    %15 = vsyncpa %s14, 0
    loop: start=0, step=1, limit=4
    $region2: #{tpu_custom_call.1} parent=1 // loop_pre_header
      _
    $region3: #{tpu_custom_call.1} parent=1 // loop_header
      %s17 = sphi 0, %s21
      %p18 = scmp.ge.s32.totalorder %s17, 4
      %s27 = sphi 0, %s29
      %s30 = sphi 0, %s27
      %s31 = sphi 0, %s30
      %s47 = sphi 0, %s31
      %s53 = sphi 0, %s55
      %s56 = sphi 0, %s53
      %s57 = sphi 0, %s56
      %s73 = sphi 0, %s57
      %s79 = sphi 0, %s81
      %s82 = sphi 0, %s79
      %s83 = sphi 0, %s82
      %s99 = sphi 0, %s83
      %s105 = sphi 0, %s107
      %s108 = sphi 0, %s105
      %s109 = sphi 0, %s108
      %s125 = sphi 0, %s109
      %s131 = sphi 0, %s133
      %s134 = sphi 0, %s131
      %s135 = sphi 0, %s134
      %s151 = sphi 0, %s135
    $region4: #{tpu_custom_call.1} parent=1 // loop_header_branch
      %20 = sbr.rel (%p18) target = $region8
    $region5: #{tpu_custom_call.1} parent=1 // loop_body
      %s22 = ssub.s32 %s17, 1
      %s23 = ssub.s32 %s17, 2
      %s24 = sadd.s32 %s17, 1
      %s25 = ssub.s32 %s17, %s24
      %p26 = scmp.eq.s32.totalorder %s25, 0
      %s28 = sadd.s32 %s27, 1
      %s29 = scalar_select %p26, %s27, %s28
      %p32 = pneg %p26
      %p33 = scmp.eq.s32.totalorder %s17, 1
      %p34 = por %p32, %p33
      %p35 = scmp.ne.s32.totalorder %s27, %s30
      %p36 = scmp.eq.s32.totalorder %s17, 0
      %p37 = por %p35, %p36
      %p38 = scmp.ne.s32.totalorder %s27, %s30
      %p39 = scmp.eq.s32.totalorder %s22, 1
      %p40 = por %p38, %p39
      %p41 = scmp.ne.s32.totalorder %s30, %s31
      %p42 = scmp.eq.s32.totalorder %s22, 0
      %p43 = por %p41, %p42
      %p44 = scmp.ne.s32.totalorder %s30, %s31
      %p45 = scmp.eq.s32.totalorder %s23, 1
      %p46 = por %p44, %p45
      %p48 = scmp.ne.s32.totalorder %s31, %s47
      %p49 = scmp.eq.s32.totalorder %s23, 0
      %p50 = por %p48, %p49
      %s51 = ssub.s32 %s17, %s24
      %p52 = scmp.eq.s32.totalorder %s51, 0
      %s54 = sadd.s32 %s53, 1
      %s55 = scalar_select %p52, %s53, %s54
      %p58 = pneg %p52
      %p59 = scmp.eq.s32.totalorder %s17, 1
      %p60 = por %p58, %p59
      %p61 = scmp.ne.s32.totalorder %s53, %s56
      %p62 = scmp.eq.s32.totalorder %s17, 0
      %p63 = por %p61, %p62
      %p64 = scmp.ne.s32.totalorder %s53, %s56
      %p65 = scmp.eq.s32.totalorder %s22, 1
      %p66 = por %p64, %p65
      %p67 = scmp.ne.s32.totalorder %s56, %s57
      %p68 = scmp.eq.s32.totalorder %s22, 0
      %p69 = por %p67, %p68
      %p70 = scmp.ne.s32.totalorder %s56, %s57
      %p71 = scmp.eq.s32.totalorder %s23, 1
      %p72 = por %p70, %p71
      %p74 = scmp.ne.s32.totalorder %s57, %s73
      %p75 = scmp.eq.s32.totalorder %s23, 0
      %p76 = por %p74, %p75
      %s77 = ssub.s32 %s17, %s24
      %p78 = scmp.eq.s32.totalorder %s77, 0
      %s80 = sadd.s32 %s79, 1
      %s81 = scalar_select %p78, %s79, %s80
      %p84 = pneg %p78
      %p85 = scmp.eq.s32.totalorder %s17, 1
      %p86 = por %p84, %p85
      %p87 = scmp.ne.s32.totalorder %s79, %s82
      %p88 = scmp.eq.s32.totalorder %s17, 0
      %p89 = por %p87, %p88
      %p90 = scmp.ne.s32.totalorder %s79, %s82
      %p91 = scmp.eq.s32.totalorder %s22, 1
      %p92 = por %p90, %p91
      %p93 = scmp.ne.s32.totalorder %s82, %s83
      %p94 = scmp.eq.s32.totalorder %s22, 0
      %p95 = por %p93, %p94
      %p96 = scmp.ne.s32.totalorder %s82, %s83
      %p97 = scmp.eq.s32.totalorder %s23, 1
      %p98 = por %p96, %p97
      %p100 = scmp.ne.s32.totalorder %s83, %s99
      %p101 = scmp.eq.s32.totalorder %s23, 0
      %p102 = por %p100, %p101
      %s103 = ssub.s32 %s17, %s24
      %p104 = scmp.eq.s32.totalorder %s103, 0
      %s106 = sadd.s32 %s105, 1
      %s107 = scalar_select %p104, %s105, %s106
      %p110 = pneg %p104
      %p111 = scmp.eq.s32.totalorder %s17, 1
      %p112 = por %p110, %p111
      %p113 = scmp.ne.s32.totalorder %s105, %s108
      %p114 = scmp.eq.s32.totalorder %s17, 0
      %p115 = por %p113, %p114
      %p116 = scmp.ne.s32.totalorder %s105, %s108
      %p117 = scmp.eq.s32.totalorder %s22, 1
      %p118 = por %p116, %p117
      %p119 = scmp.ne.s32.totalorder %s108, %s109
      %p120 = scmp.eq.s32.totalorder %s22, 0
      %p121 = por %p119, %p120
      %p122 = scmp.ne.s32.totalorder %s108, %s109
      %p123 = scmp.eq.s32.totalorder %s23, 1
      %p124 = por %p122, %p123
      %p126 = scmp.ne.s32.totalorder %s109, %s125
      %p127 = scmp.eq.s32.totalorder %s23, 0
      %p128 = por %p126, %p127
      %s129 = ssub.s32 %s17, %s24
      %p130 = scmp.eq.s32.totalorder %s129, 0
      %s132 = sadd.s32 %s131, 1
      %s133 = scalar_select %p130, %s131, %s132
      %p136 = pneg %p130
      %p137 = scmp.eq.s32.totalorder %s17, 1
      %p138 = por %p136, %p137
      %p139 = scmp.ne.s32.totalorder %s131, %s134
      %p140 = scmp.eq.s32.totalorder %s17, 0
      %p141 = por %p139, %p140
      %p142 = scmp.ne.s32.totalorder %s131, %s134
      %p143 = scmp.eq.s32.totalorder %s22, 1
      %p144 = por %p142, %p143
      %p145 = scmp.ne.s32.totalorder %s134, %s135
      %p146 = scmp.eq.s32.totalorder %s22, 0
      %p147 = por %p145, %p146
      %p148 = scmp.ne.s32.totalorder %s134, %s135
      %p149 = scmp.eq.s32.totalorder %s23, 1
      %p150 = por %p148, %p149
      %p152 = scmp.ne.s32.totalorder %s135, %s151
      %p153 = scmp.eq.s32.totalorder %s23, 0
      %p154 = por %p152, %p153
      %p155 = scmp.le.s32.totalorder 1, %s17
      %p156 = scmp.lt.s32.totalorder %s17, 3
      %p157 = pnand %p155, %p156
      %p158 = pneg %p157
      // Predicated region
      $region9: #{tpu_custom_call.1} parent=5 // pred_check
        _
      $region10: #{tpu_custom_call.1} parent=5 // pred_check_branch
        %160 = sbr.rel (%p157) target = $region12
      $region11: #{tpu_custom_call.1} parent=5 // pred_region
        %s161 = ssub.s32 %s17, 1
      $region12: #{tpu_custom_call.1} parent=5 // pred_fallthru
        _
      %p162 = scmp.lt.s32.totalorder %s17, 2
      // Predicated region
      $region13: #{tpu_custom_call.1} parent=5 // pred_check
        %p163 = pneg %p162
      $region14: #{tpu_custom_call.1} parent=5 // pred_check_branch
        %165 = sbr.rel (%p163) target = $region16
      $region15: #{tpu_custom_call.1} parent=5 // pred_region
        // Predicated region
        $region17: #{tpu_custom_call.1} parent=15 // pred_check
          %p166 = pneg %p37
        $region18: #{tpu_custom_call.1} parent=15 // pred_check_branch
          %168 = sbr.rel (%p166) target = $region20
        $region19: #{tpu_custom_call.1} parent=15 // pred_region
          %s169 = sand.u32 %s27, 1
          %s170 = sand.u32 %s27, 1
          %s171 = smul.addr %s170, 16
          %s172 = scalar_lea.vmem [#allocation2], %s171
          %s173 = smul.addr %s17, 8
          %s174 = scalar_lea.vmem %s0, %s173
          // Predicated region
          $region21: #{tpu_custom_call.1} parent=19 // pred_check
            _
          $region22: #{tpu_custom_call.1} parent=19 // pred_check_branch
            %176 = sbr.rel (0) target = $region24
          $region23: #{tpu_custom_call.1} parent=19 // pred_region
            // Predicated region
            $region25: #{tpu_custom_call.1} parent=23 // pred_check
              _
            $region26: #{tpu_custom_call.1} parent=23 // pred_check_branch
              %178 = sbr.rel (0) target = $region28
            $region27: #{tpu_custom_call.1} parent=23 // pred_region
              // Predicated region
              $region40: #{tpu_custom_call.1} parent=27 // pred_check
                _
              $region41: #{tpu_custom_call.1} parent=27 // pred_check_branch
                %195 = sbr.rel (0) target = $region43
              $region42: #{tpu_custom_call.1} parent=27 // pred_region
                loop: start=0, step=1, limit=1
                $region44: #{tpu_custom_call.1} parent=42 // loop_pre_header
                  _
                $region45: #{tpu_custom_call.1} parent=42 // loop_header
                  %s197 = sphi 0, %s201
                  %p198 = scmp.ge.s32.totalorder %s197, 1
                  %s202 = sphi %s174, %s174
                  %s203 = sphi %s172, %s172
                $region46: #{tpu_custom_call.1} parent=42 // loop_header_branch
                  %200 = sbr.rel (%p198) target = $region50
                $region47: #{tpu_custom_call.1} parent=42 // loop_body
                  %v204 = vld [vmem:[%s202] sm:$0xff]
                  %205 = vst [vmem:[%s203] sm:$0xff] %v204
                  %v206 = vld [vmem:[%s202 + $0x10] sm:$0xff]
                  %207 = vst [vmem:[%s203 + $0x8] sm:$0xff] %v206
                $region48: #{tpu_custom_call.1} parent=42 // loop_footer
                  %s201 = sadd.s32 1, %s197
                $region49: #{tpu_custom_call.1} parent=42 // loop_footer_branch
                  %196 = sbr.rel target = $region45
                $region50: #{tpu_custom_call.1} parent=42 // loop_exit
                  _
              $region43: #{tpu_custom_call.1} parent=27 // pred_fallthru
                _
              // Predicated region
              $region51: #{tpu_custom_call.1} parent=27 // pred_check
                _
              $region52: #{tpu_custom_call.1} parent=27 // pred_check_branch
                %209 = sbr.rel target = $region54
              $region53: #{tpu_custom_call.1} parent=27 // pred_region
                _
              $region54: #{tpu_custom_call.1} parent=27 // pred_fallthru
                _
            $region28: #{tpu_custom_call.1} parent=23 // pred_fallthru
              _
            // Predicated region
            $region29: #{tpu_custom_call.1} parent=23 // pred_check
              _
            $region30: #{tpu_custom_call.1} parent=23 // pred_check_branch
              %180 = sbr.rel target = $region32
            $region31: #{tpu_custom_call.1} parent=23 // pred_region
              loop: start=0, step=1, limit=1
              $region33: #{tpu_custom_call.1} parent=31 // loop_pre_header
                _
              $region34: #{tpu_custom_call.1} parent=31 // loop_header
                %s183 = sphi 0, %s187
                %p184 = scmp.ge.s32.totalorder %s183, 1
                %s188 = sphi %s174, %s174
                %s189 = sphi %s172, %s172
              $region35: #{tpu_custom_call.1} parent=31 // loop_header_branch
                %186 = sbr.rel (%p184) target = $region39
              $region36: #{tpu_custom_call.1} parent=31 // loop_body
                %v190 = vld [vmem:[%s188] sm:$0xff]
                %191 = vst [vmem:[%s189] sm:$0xff] %v190
                %v192 = vld [vmem:[%s188 + $0x10] sm:$0xff]
                %193 = vst [vmem:[%s189 + $0x8] sm:$0xff] %v192
              $region37: #{tpu_custom_call.1} parent=31 // loop_footer
                %s187 = sadd.s32 1, %s183
              $region38: #{tpu_custom_call.1} parent=31 // loop_footer_branch
                %182 = sbr.rel target = $region34
              $region39: #{tpu_custom_call.1} parent=31 // loop_exit
                _
            $region32: #{tpu_custom_call.1} parent=23 // pred_fallthru
              _
          $region24: #{tpu_custom_call.1} parent=19 // pred_fallthru
            _
          %210 = vnop
        $region20: #{tpu_custom_call.1} parent=15 // pred_fallthru
          _
        // Predicated region
        $region55: #{tpu_custom_call.1} parent=15 // pred_check
          %p211 = pneg %p63
        $region56: #{tpu_custom_call.1} parent=15 // pred_check_branch
          %213 = sbr.rel (%p211) target = $region58
        $region57: #{tpu_custom_call.1} parent=15 // pred_region
          %p214 = scmp.lt.s32.totalorder %s17, 1
          %s215 = scalar_select %p214, %s17, 1
          %s216 = smul.addr %s215, 8
          %s217 = scalar_lea.vmem %s1, %s216
        $region58: #{tpu_custom_call.1} parent=15 // pred_fallthru
          _
        // Predicated region
        $region59: #{tpu_custom_call.1} parent=15 // pred_check
          %p218 = pneg %p89
        $region60: #{tpu_custom_call.1} parent=15 // pred_check_branch
          %220 = sbr.rel (%p218) target = $region62
        $region61: #{tpu_custom_call.1} parent=15 // pred_region
          %p221 = scmp.lt.s32.totalorder %s17, 1
          %s222 = scalar_select %p221, %s17, 1
          %s223 = smul.addr %s222, 8
          %s224 = scalar_lea.vmem %s2, %s223
        $region62: #{tpu_custom_call.1} parent=15 // pred_fallthru
          _
      $region16: #{tpu_custom_call.1} parent=5 // pred_fallthru
        _
      %p225 = scmp.le.s32.totalorder 1, %s17
      %p226 = scmp.lt.s32.totalorder %s17, 3
      %p227 = pnand %p225, %p226
      %p228 = pneg %p227
      // Predicated region
      $region63: #{tpu_custom_call.1} parent=5 // pred_check
        _
      $region64: #{tpu_custom_call.1} parent=5 // pred_check_branch
        %230 = sbr.rel (%p227) target = $region66
      $region65: #{tpu_custom_call.1} parent=5 // pred_region
        %s231 = ssub.s32 %s17, 1
        %s232 = sand.u32 %s30, 1
        %s233 = sand.u32 %s30, 1
        %s234 = smul.addr %s233, 16
        %s235 = scalar_lea.vmem [#allocation2], %s234
        // Predicated region
        $region67: #{tpu_custom_call.1} parent=65 // pred_check
          %p236 = pneg %p43
        $region68: #{tpu_custom_call.1} parent=65 // pred_check_branch
          %238 = sbr.rel (%p236) target = $region70
        $region69: #{tpu_custom_call.1} parent=65 // pred_region
          _
        $region70: #{tpu_custom_call.1} parent=65 // pred_fallthru
          _
        %s239 = sand.u32 %s30, 1
        %s240 = sand.u32 %s30, 1
        %s241 = smul.addr %s240, 16
        %s242 = scalar_lea.vmem [#allocation2], %s241
        %p243 = pneg %p43
        %p244 = pneg %p40
        %p245 = scmp.lt.s32.totalorder %s22, 1
        %s246 = scalar_select %p245, %s22, 1
        %s247 = smul.addr %s246, 8
        %s248 = scalar_lea.vmem %s1, %s247
        %p249 = pneg %p69
        %p250 = pneg %p66
        %p251 = scmp.lt.s32.totalorder %s22, 1
        %s252 = scalar_select %p251, %s22, 1
        %s253 = smul.addr %s252, 8
        %s254 = scalar_lea.vmem %s2, %s253
        %p255 = pneg %p95
        %p256 = pneg %p92
        %p257 = pneg %p121
        %p258 = pneg %p118
        %s259 = sand.u32 %s108, 1
        %s260 = scalar_lea.sflag [#allocation4], %s259
        %s261 = sand.u32 %s108, 1
        %s262 = smul.addr %s261, 8
        %s263 = scalar_lea.vmem [#allocation3], %s262
        %p264 = pneg %p147
        %p265 = pneg %p144
        %s266 = sand.u32 %s134, 1
        %s267 = scalar_lea.sflag [#allocation6], %s266
        %s268 = sand.u32 %s134, 1
        %s269 = smul.addr %s268, 8
        %s270 = scalar_lea.vmem [#allocation5], %s269
        %p271 = scmp.lt.s32.totalorder %s22, 1
        %s272 = scalar_select %p271, %s22, 1
        %s273 = smul.addr %s272, 8
        %s274 = scalar_lea.vmem %s1, %s273
        %p275 = scmp.lt.s32.totalorder %s22, 1
        %s276 = scalar_select %p275, %s22, 1
        %s277 = smul.addr %s276, 8
        %s278 = scalar_lea.vmem %s2, %s277
        %v279 = vld [vmem:[%s274] sm:$0xff]
        %v280 = vld [vmem:[%s235] sm:$0xff]
        %282 = vset.pattern.permute.xlu0 0
        %283 = vperm.xlu0 %282, %v280
        %v284 = vpop.permute.xlu0 %283
        %v286 = vmul.f32 %v279, %v284
        %vm287 = vcmask 261120
        %288 = vst.msk [vmem:[%s263] sm:$0xff] %vm287, %v286
        %v289 = vld [vmem:[%s278] sm:$0xff]
        %s290 = scalar_lea.vmem %s235, 8 [#allocation2]
        %v291 = vld [vmem:[%s290] sm:$0xff]
        %293 = vset.pattern.permute.xlu0 0
        %294 = vperm.xlu0 %293, %v291
        %v295 = vpop.permute.xlu0 %294
        %v297 = vmul.f32 %v289, %v295
        %298 = vst.msk [vmem:[%s270] sm:$0xff] %vm287, %v297
        %s299 = sand.u32 %s108, 1
        %s300 = scalar_lea.sflag [#allocation4], %s299
        %s301 = sand.u32 %s108, 1
        %s302 = smul.addr %s301, 8
        %s303 = scalar_lea.vmem [#allocation3], %s302
        %s304 = sand.u32 %s134, 1
        %s305 = scalar_lea.sflag [#allocation6], %s304
        %s306 = sand.u32 %s134, 1
        %s307 = smul.addr %s306, 8
        %s308 = scalar_lea.vmem [#allocation5], %s307
        // Predicated region
        $region71: #{tpu_custom_call.1} parent=65 // pred_check
          %p309 = pneg %p118
        $region72: #{tpu_custom_call.1} parent=65 // pred_check_branch
          %311 = sbr.rel (%p309) target = $region74
        $region73: #{tpu_custom_call.1} parent=65 // pred_region
          %s313 = ssub.s32 128, 128
          %314 = vsyncadd %s300, %s313
          %s315 = smul.addr %s22, 128
          %s316 = scalar_lea.hbm %s3, %s315
          %s318 = sshll.u32 %s303, 4
          %s319 = int_to_ptr.vmem [resolvable:$true] %s318
          %321 = dma.vmem_to_hbm [thread:$0]  %s319, 128, %s316, %s300
        $region74: #{tpu_custom_call.1} parent=65 // pred_fallthru
          _
        // Predicated region
        $region75: #{tpu_custom_call.1} parent=65 // pred_check
          %p322 = pneg %p144
        $region76: #{tpu_custom_call.1} parent=65 // pred_check_branch
          %324 = sbr.rel (%p322) target = $region78
        $region77: #{tpu_custom_call.1} parent=65 // pred_region
          %s326 = ssub.s32 128, 128
          %327 = vsyncadd %s305, %s326
          %s328 = smul.addr %s22, 128
          %s329 = scalar_lea.hbm %s4, %s328
          %s331 = sshll.u32 %s308, 4
          %s332 = int_to_ptr.vmem [resolvable:$true] %s331
          %334 = dma.vmem_to_hbm [thread:$0]  %s332, 128, %s329, %s305
        $region78: #{tpu_custom_call.1} parent=65 // pred_fallthru
          _
      $region66: #{tpu_custom_call.1} parent=5 // pred_fallthru
        _
      %p335 = scmp.le.s32.totalorder 2, %s17
      // Predicated region
      $region79: #{tpu_custom_call.1} parent=5 // pred_check
        %p336 = pneg %p335
      $region80: #{tpu_custom_call.1} parent=5 // pred_check_branch
        %338 = sbr.rel (%p336) target = $region82
      $region81: #{tpu_custom_call.1} parent=5 // pred_region
        %s339 = ssub.s32 %s17, 2
        // Predicated region
        $region83: #{tpu_custom_call.1} parent=81 // pred_check
          %p340 = pneg %p124
        $region84: #{tpu_custom_call.1} parent=81 // pred_check_branch
          %342 = sbr.rel (%p340) target = $region86
        $region85: #{tpu_custom_call.1} parent=81 // pred_region
          %s343 = sand.u32 %s109, 1
          %s344 = scalar_lea.sflag [#allocation4], %s343
          %s345 = sand.u32 %s109, 1
          %s346 = smul.addr %s345, 8
          %s347 = scalar_lea.vmem [#allocation3], %s346
          %348 = dma.done %s344, 128
        $region86: #{tpu_custom_call.1} parent=81 // pred_fallthru
          _
        // Predicated region
        $region87: #{tpu_custom_call.1} parent=81 // pred_check
          %p349 = pneg %p150
        $region88: #{tpu_custom_call.1} parent=81 // pred_check_branch
          %351 = sbr.rel (%p349) target = $region90
        $region89: #{tpu_custom_call.1} parent=81 // pred_region
          %s352 = sand.u32 %s135, 1
          %s353 = scalar_lea.sflag [#allocation6], %s352
          %s354 = sand.u32 %s135, 1
          %s355 = smul.addr %s354, 8
          %s356 = scalar_lea.vmem [#allocation5], %s355
          %357 = dma.done %s353, 128
        $region90: #{tpu_custom_call.1} parent=81 // pred_fallthru
          _
      $region82: #{tpu_custom_call.1} parent=5 // pred_fallthru
        _
    $region6: #{tpu_custom_call.1} parent=1 // loop_footer
      %s21 = sadd.s32 1, %s17
    $region7: #{tpu_custom_call.1} parent=1 // loop_footer_branch
      %16 = sbr.rel target = $region3
    $region8: #{tpu_custom_call.1} parent=1 // loop_exit
      _
    %358 = vsyncpa [#allocation4], 1
    %s359 = scalar_lea.sflag [#allocation4], 1
    %360 = vsyncpa %s359, 1
    %361 = vsyncpa [#allocation6], 1
    %s362 = scalar_lea.sflag [#allocation6], 1
    %363 = vsyncpa %s362, 1

</llo_original>
